<compile_context>
chip_gen: v6e
topology: v6e:2x2x1
jax: 0.10.0
libtpu: 0.0.40
codegen_flags: <defaults>
</compile_context>

<pallas_src>
import functools

import numpy as np

import jax
import jax.numpy as jnp
from jax.experimental import pallas as pl
from jax.experimental.pallas import tpu as pltpu

EPS = 1e-5


# ----------------------------------------------------------------------------
# Roll-direction probe (runs once): returns the pltpu.roll shift that moves row
# r-1 into row r (i.e. +1 under jnp.roll conventions).
# ----------------------------------------------------------------------------
def _roll_probe_kernel(x_ref, o_ref):
    o_ref[...] = pltpu.roll(x_ref[...], 1, axis=0)


def _detect_roll_prev_shift():
    x = jnp.arange(8, dtype=jnp.float32).reshape(8, 1) * jnp.ones((1, 128),
                                                                  jnp.float32)
    y = pl.pallas_call(
        _roll_probe_kernel,
        out_shape=jax.ShapeDtypeStruct((8, 128), jnp.float32))(x)
    # jnp.roll convention: roll(x, 1)[1] == x[0] (== 0 here); otherwise it is 2.
    return 1 if float(y[1, 0]) == 0.0 else -1


# ----------------------------------------------------------------------------
# The fused kernel
# ----------------------------------------------------------------------------
def _make_kernel(prev_shift):
    def kernel(x1_ref, x2_ref, x3_ref,
               uh1_ref, uh2_ref, r_u14_ref, r_u2_ref, r_u3_ref,
               ma_c2_ref, mb_c2_ref, r_u5_ref, ma_c3_ref, mb_c3_ref, m_45_ref,
               bias_ref, mask_ref, o_ref):
        bf16 = jnp.bfloat16

        def mm(a, w):
            # MXU matmul: bf16 operands, f32 accumulation.
            return jnp.dot(a, w, preferred_element_type=jnp.float32)

        def taps(x, m_top, m_bot):
            # Row taps of a 3x3 conv (row above / at / below each output row).
            # Images of height h are stacked along axis 0; the per-row {0,1}
            # masks zero the rows that fall outside each image, so an XLU
            # sublane roll replaces the old (H,H) shift matmuls on the MXU.
            rows = x.shape[0]
            up = pltpu.roll(x, (rows + prev_shift) % rows, axis=0) * m_top
            dn = pltpu.roll(x, (rows - prev_shift) % rows, axis=0) * m_bot
            return up.astype(bf16), x.astype(bf16), dn.astype(bf16)

        def conv(t, r_ref, bias):
            # 3-tap banded conv (3x3 conv + folded BN; width/channel structure
            # is folded into the right-hand matrices on the host).
            y = mm(t[0], r_ref[0]) + mm(t[1], r_ref[1]) + mm(t[2], r_ref[2])
            return y if bias is None else y + bias

        def bias_row(i, width):
            return bias_ref[i:i + 1, :width]

        rows2 = x2_ref.shape[0]          # B * h2
        w2c = x2_ref.shape[1]            # w2 * c
        w3c = x3_ref.shape[1]            # w3 * c

        # per-row boundary masks (column vectors) for each resolution level
        m3t = mask_ref[:, 0:1]
        m3b = mask_ref[:, 1:2]
        m2t = mask_ref[:rows2, 2:3]
        m2b = mask_ref[:rows2, 3:4]

        x1 = x1_ref[...]
        x2 = x2_ref[...]
        x3 = x3_ref[...]

        # ---- level h2 x w2 ---------------------------------------------------
        # z1 = height-upsample(x1); the width upsample is folded into every
        # consumer's conv matrices and never materialized.
        z1 = mm(uh1_ref[...], x1.astype(bf16))                  # (B*h2, w1*c)
        t1 = taps(z1, m2t, m2b)

        # conv_upsample1 / conv_upsample4 share t1 (weights packed side by side)
        y14 = conv(t1, r_u14_ref, None)                         # (B*h2, 2*w2*c)
        x2_1 = (y14[:, :w2c] + bias_row(0, w2c)) * x2
        up4 = y14[:, w2c:] + bias_row(1, w2c)

        # ---- level h3 x w3 ---------------------------------------------------
        # Height upsamples stay as one block-diagonal (over the batch block)
        # matmul each; width upsamples are folded into r_u2 / r_u3 / r_u5.
        z2 = mm(uh2_ref[...], z1.astype(bf16))                  # (B*h3, w1*c)
        z3 = mm(uh2_ref[...], x2.astype(bf16))                  # (B*h3, w2*c)
        cu2 = conv(taps(z2, m3t, m3b), r_u2_ref, bias_row(2, w3c))
        cu3 = conv(taps(z3, m3t, m3b), r_u3_ref, bias_row(3, w3c))
        x3_1 = cu2 * cu3 * x3                                   # (B*h3, w3*c)

        # conv_concat2 over channel-concat(x2_1, up4); concat folded into MA/MB.
        w22 = ma_c2_ref.shape[-1]                               # w2*2c
        x2_2 = (conv(taps(x2_1, m2t, m2b), ma_c2_ref, None)
                + conv(taps(up4, m2t, m2b), mb_c2_ref, bias_row(4, w22)))

        # conv_upsample5(upsample(x2_2)); width upsample folded into r_u5.
        z4 = mm(uh2_ref[...], x2_2.astype(bf16))                # (B*h3, w2*2c)
        w32 = r_u5_ref.shape[-1]                                # w3*2c
        up5 = conv(taps(z4, m3t, m3b), r_u5_ref, bias_row(5, w32))

        # conv_concat3 over channel-concat(x3_1, up5).
        w33 = ma_c3_ref.shape[-1]                               # w3*3c
        x3_2 = (conv(taps(x3_1, m3t, m3b), ma_c3_ref, None)
                + conv(taps(up5, m3t, m3b), mb_c3_ref, bias_row(6, w33)))

        # conv4 (3x3 + BN) with conv5 (1x1 conv + bias) folded into m_45 / b_45.
        wo = m_45_ref.shape[-1]                                 # w3*out_ch
        o_ref[...] = conv(taps(x3_2, m3t, m3b), m_45_ref, bias_row(7, wo))

    return kernel


# ----------------------------------------------------------------------------
# Wrapper around pallas_call
# ----------------------------------------------------------------------------
@functools.partial(jax.jit, static_argnames=("batch_block", "prev_shift"))
def _aggregation_jit(params, x1, x2, x3, batch_block, prev_shift):
    (uh1, uh2, r_u14, r_u2, r_u3, ma_c2, mb_c2, r_u5, ma_c3, mb_c3, m_45,
     bias_slab, masks) = params
    n, c, h1, w1 = x1.shape
    h2, w2 = x2.shape[2], x2.shape[3]
    h3, w3 = x3.shape[2], x3.shape[3]
    out_ch = m_45.shape[-1] // w3
    b = batch_block
    assert n % b == 0

    def flat(x):                 # NCHW -> lane-dense (N*H, W*C)
        nn, ch, hh, ww = x.shape
        return jnp.transpose(x, (0, 2, 3, 1)).reshape(nn * hh, ww * ch)

    x1f, x2f, x3f = flat(x1), flat(x2), flat(x3)

    def act_spec(rows, cols):
        return pl.BlockSpec((rows, cols), lambda i: (i, 0))

    def const_spec(w):
        return pl.BlockSpec(w.shape, lambda i, _nd=w.ndim: (0,) * _nd)

    out_flat = pl.pallas_call(
        _make_kernel(prev_shift),
        out_shape=jax.ShapeDtypeStruct((n * h3, w3 * out_ch), jnp.float32),
        grid=(n // b,),
        in_specs=[act_spec(b * h1, w1 * c),
                  act_spec(b * h2, w2 * c),
                  act_spec(b * h3, w3 * c)] + [const_spec(w) for w in params],
        out_specs=pl.BlockSpec((b * h3, w3 * out_ch), lambda i: (i, 0)),
        compiler_params=pltpu.CompilerParams(
            dimension_semantics=("parallel",),        # v7x: 2 TCs split the grid
            vmem_limit_bytes=32 * 1024 * 1024),
    )(x1f, x2f, x3f, *params)

    out = out_flat.reshape(n, h3, w3, out_ch)
    return jnp.transpose(out, (0, 3, 1, 2))           # back to NCHW


def aggregation_forward(params, x1, x2, x3, batch_block, prev_shift):
    return _aggregation_jit(params, x1, x2, x3,
                            batch_block=batch_block, prev_shift=prev_shift)


def _pick_batch_block(n, h3, target_rows=256):
    # Fill the MXU (B*h3 rows up to ~256) while keeping >= 2 grid steps for v7x.
    divs = [d for d in range(1, n + 1) if n % d == 0]
    cands = [d for d in divs if d * h3 <= target_rows] or [1]
    multi = [d for d in cands if n // d >= 2]
    return max(multi if multi else cands)


# ----------------------------------------------------------------------------
# Host-side folding of the module into the kernel's weight tuple
# ----------------------------------------------------------------------------
def _fold_bn(w_oihw, gamma, beta, mean, var):
    scale = gamma / np.sqrt(var + EPS)
    return (w_oihw * scale[:, None, None, None]).astype(np.float32), \
           (beta - mean * scale).astype(np.float32)


def _interp_matrix(n_in, n_out):
    # bilinear 2x, align_corners=True (the module sets align_corners=True)
    if n_in == 1:
        return np.ones((n_out, n_in), np.float32)
    pos = np.arange(n_out, dtype=np.float64) * (n_in - 1) / (n_out - 1)
    lo = np.floor(pos).astype(np.int64)
    hi = np.minimum(lo + 1, n_in - 1)
    frac = (pos - lo).astype(np.float32)
    m = np.zeros((n_out, n_in), np.float32)
    m[np.arange(n_out), lo] += 1.0 - frac
    m[np.arange(n_out), hi] += frac
    return m


def _upsample_width_mat(w_in, ch):
    uw = _interp_matrix(w_in, 2 * w_in)                      # (2w, w)
    return np.kron(uw.T, np.eye(ch, dtype=np.float32)).astype(np.float32)


def _conv_width_mats(w_oihw, width):
    # M[dy, wi*Cin+ci, wo*Cout+co] = w[co, ci, dy, dx] with wi = wo + dx - 1
    cout, cin = w_oihw.shape[:2]
    m = np.zeros((3, width * cin, width * cout), np.float32)
    for dy in range(3):
        for dx in range(3):
            tap = w_oihw[:, :, dy, dx].T                     # (cin, cout)
            for wo in range(width):
                wi = wo + dx - 1
                if 0 <= wi < width:
                    m[dy, wi * cin:(wi + 1) * cin,
                      wo * cout:(wo + 1) * cout] = tap
    return m


def _bias_row(bvec, width):
    return np.tile(np.asarray(bvec, np.float32), width)      # lane = w*Cout + co


def prepare_params(raw, channel, out_channels, h1, w1, batch_block):
    c, b = channel, batch_block
    h2, w2, h3, w3 = 2 * h1, 2 * w1, 4 * h1, 4 * w1

    w_u1, b_u1 = raw["u1"]
    w_u2, b_u2 = raw["u2"]
    w_u3, b_u3 = raw["u3"]
    w_u4, b_u4 = raw["u4"]
    w_u5, b_u5 = raw["u5"]
    w_c2, b_c2 = raw["c2"]
    w_c3, b_c3 = raw["c3"]
    w_c4, b_c4 = raw["c4"]
    w_5, b_5 = raw["c5"]

    # block-diagonal (over the batch block) height-upsample matrices
    eye_b = np.eye(b, dtype=np.float32)
    uh1 = np.kron(eye_b, _interp_matrix(h1, h2))             # (b*h2, b*h1)
    uh2 = np.kron(eye_b, _interp_matrix(h2, h3))             # (b*h3, b*h2)

    # width upsamples (folded into the consuming convs below)
    uw1 = _upsample_width_mat(w1, c)                         # (w1*c,  w2*c)
    uw2 = _upsample_width_mat(w2, c)                         # (w2*c,  w3*c)
    uw2b = _upsample_width_mat(w2, 2 * c)                    # (w2*2c, w3*2c)

    def fold(left, taps_):
        return np.einsum("ab,dbc->dac", left, taps_).astype(np.float32)

    r_u1 = fold(uw1, _conv_width_mats(w_u1, w2))             # (3, w1*c, w2*c)
    r_u4 = fold(uw1, _conv_width_mats(w_u4, w2))
    r_u14 = np.concatenate([r_u1, r_u4], axis=2)             # (3, w1*c, 2*w2*c)
    r_u2 = fold(uw1 @ uw2, _conv_width_mats(w_u2, w3))       # (3, w1*c, w3*c)
    r_u3 = fold(uw2, _conv_width_mats(w_u3, w3))             # (3, w2*c, w3*c)
    ma_c2 = _conv_width_mats(w_c2[:, :c], w2)                # (3, w2*c, w2*2c)
    mb_c2 = _conv_width_mats(w_c2[:, c:], w2)
    r_u5 = fold(uw2b, _conv_width_mats(w_u5, w3))            # (3, w2*2c, w3*2c)
    ma_c3 = _conv_width_mats(w_c3[:, :c], w3)                # (3, w3*c, w3*3c)
    mb_c3 = _conv_width_mats(w_c3[:, c:], w3)                # (3, w3*2c, w3*3c)

    # conv4 (3x3 + BN) with conv5 (1x1 conv + bias) folded in
    m_c4 = _conv_width_mats(w_c4, w3)
    k5 = np.kron(np.eye(w3, dtype=np.float32), w_5[:, :, 0, 0].T)
    m_45 = np.einsum("dab,bc->dac", m_c4, k5).astype(np.float32)
    b_45 = _bias_row(b_c4, w3) @ k5 + _bias_row(b_5, w3)

    # bias rows packed into one slab (row order matches bias_row() in-kernel)
    bias_rows = [_bias_row(b_u1, w2), _bias_row(b_u4, w2),
                 _bias_row(b_u2, w3), _bias_row(b_u3, w3),
                 _bias_row(b_c2, w2), _bias_row(b_u5, w3),
                 _bias_row(b_c3, w3), b_45]
    maxw = max(r.shape[-1] for r in bias_rows)
    bias_slab = np.zeros((8, maxw), np.float32)
    for i, r in enumerate(bias_rows):
        bias_slab[i, :r.shape[-1]] = r

    # per-row {0,1} masks for the conv row taps (cols: top3, bot3, top2, bot2)
    rows2, rows3 = b * h2, b * h3
    masks = np.ones((rows3, 4), np.float32)
    r3 = np.arange(rows3)
    masks[:, 0] = (r3 % h3 != 0).astype(np.float32)
    masks[:, 1] = (r3 % h3 != h3 - 1).astype(np.float32)
    r2 = np.arange(rows2)
    masks[:rows2, 2] = (r2 % h2 != 0).astype(np.float32)
    masks[:rows2, 3] = (r2 % h2 != h2 - 1).astype(np.float32)

    def bf(x):
        return jnp.asarray(x, jnp.bfloat16)

    return (bf(uh1), bf(uh2), bf(r_u14), bf(r_u2), bf(r_u3), bf(ma_c2),
            bf(mb_c2), bf(r_u5), bf(ma_c3), bf(mb_c3), bf(m_45),
            jnp.asarray(bias_slab, jnp.float32),
            jnp.asarray(masks, jnp.float32))


def init_raw_params(key, channel, out_channels):
    """Random Conv+BN params (BN folded with eval-mode running stats)."""
    c = channel
    keys = jax.random.split(key, 9)

    def basic_conv(k, cin, cout):
        kw, kg, kb, km, kv = jax.random.split(k, 5)
        w = np.asarray(0.1 * jax.random.normal(kw, (cout, cin, 3, 3), jnp.float32))
        gamma = np.asarray(1.0 + 0.1 * jax.random.normal(kg, (cout,), jnp.float32))
        beta = np.asarray(0.1 * jax.random.normal(kb, (cout,), jnp.float32))
        rmean = np.asarray(0.1 * jax.random.normal(km, (cout,), jnp.float32))
        rvar = np.asarray(0.9 + 0.1 * jnp.abs(jax.random.normal(kv, (cout,), jnp.float32)))
        return _fold_bn(w, gamma, beta, rmean, rvar)

    raw = {
        "u1": basic_conv(keys[0], c, c),
        "u2": basic_conv(keys[1], c, c),
        "u3": basic_conv(keys[2], c, c),
        "u4": basic_conv(keys[3], c, c),
        "u5": basic_conv(keys[4], 2 * c, 2 * c),
        "c2": basic_conv(keys[5], 2 * c, 2 * c),
        "c3": basic_conv(keys[6], 3 * c, 3 * c),
        "c4": basic_conv(keys[7], 3 * c, 3 * c),
    }
    kw5, kb5 = jax.random.split(keys[8])
    w5 = np.asarray(0.1 * jax.random.normal(kw5, (out_channels, 3 * c, 1, 1), jnp.float32))
    b5 = np.asarray(0.1 * jax.random.normal(kb5, (out_channels,), jnp.float32))
    raw["c5"] = (w5, b5)
    return raw


# ----------------------------------------------------------------------------
# Pure-JAX (XLA, f32) reference of the PyTorch forward, for the self-check
# ----------------------------------------------------------------------------
def _ref_conv(x, w, b, padding):
    y = jax.lax.conv_general_dilated(
        x, jnp.asarray(w, jnp.float32), window_strides=(1, 1),
        padding=((padding, padding), (padding, padding)),
        dimension_numbers=("NCHW", "OIHW", "NCHW"))
    return y + jnp.asarray(b, jnp.float32)[None, :, None, None]


def _ref_upsample(x):
    _, _, h, w = x.shape
    mh = jnp.asarray(_interp_matrix(h, 2 * h))
    mw = jnp.asarray(_interp_matrix(w, 2 * w))
    return jnp.einsum("oh,nchw,pw->ncop", mh, x, mw)


def reference_forward(raw, x1, x2, x3):
    up = _ref_upsample
    cv = lambda name, x: _ref_conv(x, *raw[name], padding=1)
    x1_1 = x1
    x2_1 = cv("u1", up(x1)) * x2
    x3_1 = cv("u2", up(up(x1))) * cv("u3", up(x2)) * x3
    x2_2 = jnp.concatenate((x2_1, cv("u4", up(x1_1))), axis=1)
    x2_2 = cv("c2", x2_2)
    x3_2 = jnp.concatenate((x3_1, cv("u5", up(x2_2))), axis=1)
    x3_2 = cv("c3", x3_2)
    x = cv("c4", x3_2)
    x = _ref_conv(x, *raw["c5"], padding=0)
    return x


# ----------------------------------------------------------------------------
if __name__ == "__main__":
    key = jax.random.PRNGKey(0)
    channel, out_channels = 4, 1
    h1 = w1 = 8
    n = 8

    k_in, k_par = jax.random.split(key)
    k1, k2, k3 = jax.random.split(k_in, 3)
    # x1 is the coarsest feature map; x2 / x3 are 2x / 4x its resolution.
    x1 = jax.random.normal(k1, (n, channel, h1, w1), jnp.float32)
    x2 = jax.random.normal(k2, (n, channel, 2 * h1, 2 * w1), jnp.float32)
    x3 = jax.random.normal(k3, (n, channel, 4 * h1, 4 * w1), jnp.float32)

    raw = init_raw_params(k_par, channel, out_channels)

    h3 = 4 * h1
    batch_block = _pick_batch_block(n, h3)          # n=8, h3=32 -> B=4, grid=2
    params = prepare_params(raw, channel, out_channels, h1, w1, batch_block)
    prev_shift = _detect_roll_prev_shift()

    out = aggregation_forward(params, x1, x2, x3, batch_block, prev_shift)
    out = jax.block_until_ready(out)
    assert out.shape == (n, out_channels, 4 * h1, 4 * w1), out.shape
    assert bool(jnp.all(jnp.isfinite(out)))

    # numerical self-check against a plain-XLA f32 implementation of the module
    # (tolerance re-validated for the bf16 matmul operands used in the kernel)
    ref = jax.block_until_ready(reference_forward(raw, x1, x2, x3))
    max_err = float(jnp.max(jnp.abs(out - ref)))
    scale = max(float(jnp.max(jnp.abs(ref))), 1.0)
    assert max_err <= 2e-2 * scale, f"mismatch vs reference: {max_err} (scale {scale})"

    print("KERNEL_OK")
</pallas_src>

<mosaic_0001>
module attributes {stable_mosaic.version = 11 : i64} {
  func.func @_roll_probe_kernel(%arg0: memref<8x128xf32, #tpu.memory_space<vmem>>, %arg1: memref<8x128xf32, #tpu.memory_space<vmem>>) attributes {dimension_semantics = [], scalar_prefetch = 0 : i64, scratch_operands = 0 : i64, tpu.core_type = #tpu.core_type<tc>} {
    %c0 = arith.constant 0 : index
    %c0_0 = arith.constant 0 : index
    %0 = vector.load %arg0[%c0, %c0_0] : memref<8x128xf32, #tpu.memory_space<vmem>>, vector<8x128xf32>
    %c1_i32 = arith.constant 1 : i32
    %1 = tpu.dynamic_rotate %0 by %c1_i32 dim 0 : vector<8x128xf32>, i32 -> vector<8x128xf32>
    %c0_1 = arith.constant 0 : index
    %c0_2 = arith.constant 0 : index
    %2 = vector.load %arg1[%c0_1, %c0_2] : memref<8x128xf32, #tpu.memory_space<vmem>>, vector<8x128xf32>
    tpu.vector_store %arg1[%c0_1, %c0_2], %1 {strides = array<i32>} : memref<8x128xf32, #tpu.memory_space<vmem>>, vector<8x128xf32>,
    return
  }
}

</mosaic_0001>

<llo_original>
// kernel: tpu_custom_call.1
$region0: #{tpu_custom_call.1}
  #allocation0 [shape = 'u32[]', space=smem, size = 0x4, offset = 0x4, fixed_abs, tag = 'smem constant byte address 0x4 - core index']
  #allocation1 [shape = 'u32[144,128]{1,0:T(1,128)}', space=vmem, size = 0x12000, scoped, tag = 'internal scratch']
  %s0 = inlined_call_operand.hbm [shape: f32[8,128], index: 0, kind: input, shape index: {}]
  %s1 = inlined_call_operand.hbm [shape: f32[8,128], index: 1, kind: output, shape index: {}]
  %s2 = sld [smem:[#allocation0]]
  $region18: #{tpu_custom_call.1} parent=0
    _
  %s4 = ssub.s32 1, %s2
  %s5 = scalar_select 0, %s4, %s2
  $region1: #{tpu_custom_call.1} parent=0
    #allocation2 [shape = 'u8[4096]{0}', space=vmem, size = 0x1000, scoped, tag = 'input window, operand 0, single buffered']
    #allocation3 [shape = 's32[1]{0}', space=sflag, size = 0x4, scoped, tag = 'scoped memory for tpu_custom_call.1']
    #allocation4 [shape = 's32[1]{0}', space=sflag, size = 0x4, scoped, tag = 'scoped memory for tpu_custom_call.1']
    #allocation5 [shape = 'u8[4096]{0}', space=vmem, size = 0x1000, scoped, tag = 'output window, operand 0, single buffered']
    %6 = vsyncpa [#allocation3], 0
    %7 = vsyncpa [#allocation4], 0
    // Predicated region
    $region2: #{tpu_custom_call.1} parent=1 // pred_check
      _
    $region3: #{tpu_custom_call.1} parent=1 // pred_check_branch
      %9 = sbr.rel (0) target = $region5
    $region4: #{tpu_custom_call.1} parent=1 // pred_region
      %s11 = ssub.s32 128, 128
      %12 = vsyncadd [#allocation3], %s11
      %s14 = sshll.u32 [#allocation2], 4
      %s15 = int_to_ptr.vmem [resolvable:$true] %s14
      %17 = dma.hbm_to_vmem [thread:$0]  %s0, 128, %s15, [#allocation3]
    $region5: #{tpu_custom_call.1} parent=1 // pred_fallthru
      _
    // Predicated region
    $region6: #{tpu_custom_call.1} parent=1 // pred_check
      _
    $region7: #{tpu_custom_call.1} parent=1 // pred_check_branch
      %19 = sbr.rel (0) target = $region9
    $region8: #{tpu_custom_call.1} parent=1 // pred_region
      %20 = dma.done [#allocation3], 128
    $region9: #{tpu_custom_call.1} parent=1 // pred_fallthru
      _
    %v21 = vld [vmem:[#allocation2] sm:$0xff]
    %v22 = vrot.slane %v21, 7
    %23 = vst [vmem:[#allocation5] sm:$0xff] %v22
    // Predicated region
    $region10: #{tpu_custom_call.1} parent=1 // pred_check
      _
    $region11: #{tpu_custom_call.1} parent=1 // pred_check_branch
      %25 = sbr.rel (0) target = $region13
    $region12: #{tpu_custom_call.1} parent=1 // pred_region
      %s27 = ssub.s32 128, 128
      %28 = vsyncadd [#allocation4], %s27
      %s30 = sshll.u32 [#allocation5], 4
      %s31 = int_to_ptr.vmem [resolvable:$true] %s30
      %33 = dma.vmem_to_hbm [thread:$0]  %s31, 128, %s1, [#allocation4]
    $region13: #{tpu_custom_call.1} parent=1 // pred_fallthru
      _
    // Predicated region
    $region14: #{tpu_custom_call.1} parent=1 // pred_check
      _
    $region15: #{tpu_custom_call.1} parent=1 // pred_check_branch
      %35 = sbr.rel (0) target = $region17
    $region16: #{tpu_custom_call.1} parent=1 // pred_region
      %36 = dma.done [#allocation4], 128
    $region17: #{tpu_custom_call.1} parent=1 // pred_fallthru
      _
    %37 = vsyncpa [#allocation3], 1
    %38 = vsyncpa [#allocation4], 1

</llo_original>
